<compile_context>
chip_gen: v7x
topology: tpu7x:2x2x1
jax: 0.10.0
libtpu: 0.0.40
codegen_flags: <defaults>
</compile_context>

<pallas_src>
import functools

import numpy as np
import jax
import jax.numpy as jnp
from jax import lax
from jax.experimental import pallas as pl
from jax.experimental.pallas import tpu as pltpu


# ---------------------------------------------------------------------------
# helpers
# ---------------------------------------------------------------------------
def _round_up(x, m):
    return ((x + m - 1) // m) * m


def _pad_cols(a, target):
    pad = target - a.shape[1]
    if pad == 0:
        return a
    return jnp.pad(a, ((0, 0), (0, pad)))


def _choose_cov_tile(d):
    # Lane-dense output tiles for the write-bound cov kernel.  512 reaches
    # ~85% of HBM roofline (vs ~29% at 128); 256-multiples fill whole MXU
    # result tiles on v6e/v7x.  128 only for tiny D (whole matrix is one tile).
    if d >= 512:
        return 512
    if d >= 256:
        return 256
    return 128


def _choose_stats_tile(dp, td):
    # Biggest streaming tile that divides Dp; VMEM cost is only (M, TDf) f32
    # per buffer so we can grow well past the cov tile.
    tdf = td
    while dp % (tdf * 2) == 0 and tdf * 2 <= 2048:
        tdf *= 2
    return tdf


# ---------------------------------------------------------------------------
# Pallas kernel 1: streamed ensemble statistics
#   (energy mean/std, forces mean, centered forces, M×M Gram)
# ---------------------------------------------------------------------------
def _ensemble_stats_kernel(e_ref, f_ref, *out_and_scratch, emit_fc):
    if emit_fc:
        estats_ref, fmean_ref, fc_ref, gram_ref, gram_acc = out_and_scratch
    else:
        estats_ref, fmean_ref, gram_ref, gram_acc = out_and_scratch
        fc_ref = None

    k = pl.program_id(0)
    nk = pl.num_programs(0)
    M = f_ref.shape[0]
    denom = max(M - 1, 1)   # M == 1: torch/np give NaN here; we return 0s instead.

    @pl.when(k == 0)
    def _():
        gram_acc[...] = jnp.zeros_like(gram_acc)
        # Energy stats once; the (M, Gp) block has a constant index map so it is
        # DMA'd a single time and stays resident.
        e = e_ref[...].astype(jnp.float32)                              # (M, Gp)
        e_mean = jnp.mean(e, axis=0, keepdims=True)
        e_ctr = e - e_mean
        e_std = jnp.sqrt(jnp.sum(e_ctr * e_ctr, axis=0, keepdims=True) / denom)
        estats_ref[0:1, :] = e_mean
        estats_ref[1:2, :] = e_std

    # --- streamed forces tile: per-lane mean, center, write, Gram partial ---
    f = f_ref[...].astype(jnp.float32)                                  # (M, TDf)
    fm = jnp.mean(f, axis=0, keepdims=True)                             # (1, TDf)
    fc = f - fm
    fmean_ref[...] = fm
    if emit_fc:
        fc_ref[...] = fc

    # (M, M) Gram partial for this Dp tile (contraction over the lane axis).
    # M is tiny, so any Mosaic-inserted operand shuffle here is negligible.
    gram_acc[...] += lax.dot_general(
        fc, fc, (((1,), (1,)), ((), ())),
        preferred_element_type=jnp.float32)

    @pl.when(k == nk - 1)
    def _():
        gram_ref[...] = gram_acc[...] / denom


def ensemble_statistics(e2d_padded, fflat_padded, tdf, emit_fc):
    M, Gp = e2d_padded.shape
    _, Dp = fflat_padded.shape
    nk = Dp // tdf

    out_shape = [
        jax.ShapeDtypeStruct((2, Gp), jnp.float32),    # row0 = e_mean, row1 = e_std
        jax.ShapeDtypeStruct((1, Dp), jnp.float32),    # forces mean (flat, padded)
    ]
    out_specs = [
        pl.BlockSpec((2, Gp), lambda k: (0, 0)),       # resident, written at k==0
        pl.BlockSpec((1, tdf), lambda k: (0, k)),      # per-tile slice
    ]
    if emit_fc:
        out_shape.append(jax.ShapeDtypeStruct((M, Dp), jnp.float32))   # centered forces
        out_specs.append(pl.BlockSpec((M, tdf), lambda k: (0, k)))
    out_shape.append(jax.ShapeDtypeStruct((M, M), jnp.float32))        # Gram = fc fc^T/(M-1)
    out_specs.append(pl.BlockSpec((M, M), lambda k: (0, 0)))           # resident accumulator target

    # TODO(synk): on v7x a leading size-2 "parallel" grid axis could split the Dp
    # stream across both TensorCores (partial Grams summed in XLA); omitted here.
    return pl.pallas_call(
        functools.partial(_ensemble_stats_kernel, emit_fc=emit_fc),
        out_shape=tuple(out_shape),
        grid=(nk,),
        in_specs=[
            pl.BlockSpec((M, Gp), lambda k: (0, 0)),   # energies: one DMA, resident
            pl.BlockSpec((M, tdf), lambda k: (0, k)),  # forces: streamed/pipelined
        ],
        out_specs=tuple(out_specs),
        scratch_shapes=[pltpu.VMEM((M, M), jnp.float32)],
        compiler_params=pltpu.CompilerParams(
            dimension_semantics=("arbitrary",),            # reduction axis
            vmem_limit_bytes=32 * 1024 * 1024),            # explicit (v5e default is 16 MiB)
    )(e2d_padded, fflat_padded)


# ---------------------------------------------------------------------------
# Pallas kernel 2: tiled D×D covariance  cov[i,j] = fc_i^T @ fc_j / (M-1)
# Both inputs are lane-dense (M, TD) tiles of the centered forces emitted by
# kernel 1; the transpose happens inside the MXU matmul (contract dim 0), so
# there is no wrapper-side (Dp, M) transposed copy and no lane-sparse layout.
# ---------------------------------------------------------------------------
def _cov_tile_kernel(fci_ref, fcj_ref, cov_ref):
    M = fci_ref.shape[0]
    inv = 1.0 / max(M - 1, 1)
    cov_ref[...] = lax.dot_general(
        fci_ref[...], fcj_ref[...],
        (((0,), (0,)), ((), ())),                      # transposed-LHS matmul
        preferred_element_type=jnp.float32) * inv


def covariance_matrix(fc_padded, td):
    """fc_padded: (M, Dp) centered, zero-padded forces; Dp % td == 0."""
    M, Dp = fc_padded.shape
    grid = (Dp // td, Dp // td)
    return pl.pallas_call(
        _cov_tile_kernel,
        out_shape=jax.ShapeDtypeStruct((Dp, Dp), jnp.float32),
        grid=grid,
        in_specs=[
            pl.BlockSpec((M, td), lambda i, j: (0, i)),   # fc row-tile
            pl.BlockSpec((M, td), lambda i, j: (0, j)),   # fc col-tile
        ],
        out_specs=pl.BlockSpec((td, td), lambda i, j: (i, j)),
        compiler_params=pltpu.CompilerParams(
            dimension_semantics=("parallel", "parallel"),
            vmem_limit_bytes=32 * 1024 * 1024),
    )(fc_padded, fc_padded)


# ---------------------------------------------------------------------------
# Synthetic ensemble "models" (stand-in for trained DimeNet++ members):
# quadratic per-atom energy so that forces = -dE/dpos is well defined.
# ---------------------------------------------------------------------------
def make_models(n_models, key):
    params = []
    for k in jax.random.split(key, n_models):
        kW, kb = jax.random.split(k)
        W = jax.random.normal(kW, (3, 3), jnp.float32) * 0.1
        b = jax.random.normal(kb, (), jnp.float32)
        params.append((W, b))
    return params


def model_energy(params, pos, z, batch, n_graphs):
    W, b = params
    zscale = 1.0 + 0.1 * z.astype(jnp.float32)
    per_atom = 0.5 * jnp.sum((pos @ W) * pos, axis=-1) * zscale         # (N,)
    energy = jax.ops.segment_sum(per_atom, batch, num_segments=n_graphs) + b
    return energy[:, None]                                              # (G, 1)


def predict(models, pos, z, batch, n_graphs):
    """Mirrors Ensemble.predict: energy per model, forces = -grad(energy.sum(), pos)."""
    e_list, f_list = [], []
    for params in models:
        energy = model_energy(params, pos, z, batch, n_graphs)

        def e_sum(p, params=params):
            return jnp.sum(model_energy(params, p, z, batch, n_graphs))

        forces = -jax.grad(e_sum)(pos)                                  # (N, 3)
        e_list.append(energy)
        f_list.append(forces)
    return jnp.stack(e_list), jnp.stack(f_list)          # (M, G, 1), (M, N, 3)


# ---------------------------------------------------------------------------
# Ensemble.forward
# ---------------------------------------------------------------------------
def ensemble_forward(models, pos, z, batch, n_graphs, compute_full_cov=None):
    energy_samples, forces_samples = predict(models, pos, z, batch, n_graphs)
    M, N = forces_samples.shape[0], forces_samples.shape[1]
    G = n_graphs
    D = N * 3

    # det(cov) can only be nonzero when the ensemble spans all D directions.
    det_can_be_nonzero = (M - 1) >= D
    if compute_full_cov is None:
        compute_full_cov = det_can_be_nonzero
    need_cov = compute_full_cov or det_can_be_nonzero    # det must see a real cov

    e2d = energy_samples[..., 0]                         # (M, G)
    fflat = forces_samples.reshape(M, -1)                # (M, D)

    TD = _choose_cov_tile(D)
    Dp = _round_up(D, TD)                                # multiple of the cov tile
    Gp = _round_up(G, 128)
    TDf = _choose_stats_tile(Dp, TD)

    # NOTE: for very large D this pad is an extra HBM pass; fuse it with
    # predict()'s output (or mask the ragged last tile in-kernel) if it shows up.
    e2d_p = _pad_cols(e2d.astype(jnp.float32), Gp)
    fflat_p = _pad_cols(fflat.astype(jnp.float32), Dp)

    stats = ensemble_statistics(e2d_p, fflat_p, TDf, emit_fc=need_cov)
    if need_cov:
        estats, f_mean_p, fc_p, gram = stats
    else:
        estats, f_mean_p, gram = stats
        fc_p = None

    e_mean = estats[0, :G]                               # (G,)
    e_std = estats[1, :G]                                # (G,)
    f_mean = f_mean_p[0, :D]                             # (D,)

    energy = e_mean[:, None]                             # == energy_samples.mean(0)
    forces = f_mean.reshape(N, 3)                        # == forces_samples.mean(0)
    energy_uncertainty = jnp.squeeze(e_std)              # == energy_samples.std(0).squeeze()

    # trace(cov) == trace(Gram); largest eig of cov == largest eig of Gram
    # (shared nonzero spectrum) — both from the tiny (M, M) matrix.
    trace = jnp.trace(gram)
    largest_eig = jnp.linalg.eigvalsh(gram)[-1]          # no Pallas lowering; (M, M) only

    if need_cov:
        cov = covariance_matrix(fc_p, TD)[:D, :D]        # tiled Pallas kernel
    else:
        cov = None

    if det_can_be_nonzero:
        # TODO(synk): reference uses float64 np.cov; this det is float32
        # (consider slogdet / x64 on this tiny matrix if precision matters).
        det = jnp.linalg.det(cov)
    else:
        det = jnp.float32(0.0)                           # rank(cov) <= M-1 < D

    # TODO(synk): torch.distributions.Normal(energy, std + 1e-5) has no Pallas
    # equivalent; the distribution parameters are returned instead.
    return {
        "energy": energy,
        "forces": forces,
        "energy_uncertainty": energy_uncertainty,
        "det": det,
        "trace": trace,
        "largest_eig": largest_eig,
        "energy_distribution_loc": energy,
        "energy_distribution_scale": energy_uncertainty + 1e-5,
    }


# ---------------------------------------------------------------------------
# Pure-jnp reference (for correctness checking only)
# ---------------------------------------------------------------------------
def _reference(energy_samples, forces_samples):
    M = energy_samples.shape[0]
    denom = max(M - 1, 1)
    e2d = energy_samples[..., 0]
    fflat = forces_samples.reshape(M, -1)
    e_mean = e2d.mean(0)
    e_std = jnp.std(e2d, axis=0, ddof=1)
    f_mean = fflat.mean(0)
    fc = fflat - f_mean
    gram = fc @ fc.T / denom
    trace = jnp.sum(fc * fc) / denom
    largest_eig = jnp.linalg.eigvalsh(gram)[-1]
    return e_mean, e_std, f_mean, trace, largest_eig, fc


if __name__ == "__main__":
    key = jax.random.PRNGKey(0)
    k_pos, k_models, k_pos2 = jax.random.split(key, 3)

    n_models = 4
    models = make_models(n_models, k_models)

    # ---- case 1: small; exercises kernel 1 (grid=1) AND the cov kernel -----
    n_graphs = 2
    atoms_per_graph = 4
    n_atoms = n_graphs * atoms_per_graph                  # 8 atoms -> D = 24
    pos = jax.random.normal(k_pos, (n_atoms, 3), jnp.float32)
    z = (jnp.arange(n_atoms, dtype=jnp.int32) % 5) + 1
    batch = jnp.repeat(jnp.arange(n_graphs, dtype=jnp.int32), atoms_per_graph)

    out = ensemble_forward(models, pos, z, batch, n_graphs, compute_full_cov=True)
    jax.block_until_ready(out)

    es, fs = predict(models, pos, z, batch, n_graphs)
    e_mean_r, e_std_r, f_mean_r, trace_r, leig_r, fc_r = _reference(es, fs)
    np.testing.assert_allclose(np.asarray(out["energy"][:, 0]), np.asarray(e_mean_r),
                               rtol=1e-3, atol=1e-4)
    np.testing.assert_allclose(np.asarray(out["energy_uncertainty"]), np.asarray(e_std_r),
                               rtol=1e-3, atol=1e-4)
    np.testing.assert_allclose(np.asarray(out["forces"].reshape(-1)), np.asarray(f_mean_r),
                               rtol=1e-3, atol=1e-4)
    np.testing.assert_allclose(np.asarray(out["trace"]), np.asarray(trace_r),
                               rtol=1e-3, atol=1e-4)
    np.testing.assert_allclose(np.asarray(out["largest_eig"]), np.asarray(leig_r),
                               rtol=1e-3, atol=1e-4)

    # direct check of the tiled covariance kernel
    D = fs.shape[1] * 3
    TD = _choose_cov_tile(D)
    Dp = _round_up(D, TD)
    fflat_p = _pad_cols(fs.reshape(n_models, -1).astype(jnp.float32), Dp)
    fc_p = fflat_p - fflat_p.mean(0, keepdims=True)
    cov_k = covariance_matrix(fc_p, TD)[:D, :D]
    cov_r = fc_r.T @ fc_r / (n_models - 1)
    np.testing.assert_allclose(np.asarray(cov_k), np.asarray(cov_r), rtol=1e-3, atol=1e-4)

    # ---- case 2: D spans multiple tiles -> multi-step streamed reduction ---
    atoms_per_graph2 = 176
    n_atoms2 = 2 * atoms_per_graph2                       # D = 1056 -> grid=(3,)
    pos2 = jax.random.normal(k_pos2, (n_atoms2, 3), jnp.float32)
    z2 = (jnp.arange(n_atoms2, dtype=jnp.int32) % 5) + 1
    batch2 = jnp.repeat(jnp.arange(2, dtype=jnp.int32), atoms_per_graph2)

    out2 = ensemble_forward(models, pos2, z2, batch2, 2)
    jax.block_until_ready(out2)

    es2, fs2 = predict(models, pos2, z2, batch2, 2)
    _, _, f_mean_r2, trace_r2, leig_r2, _ = _reference(es2, fs2)
    np.testing.assert_allclose(np.asarray(out2["forces"].reshape(-1)), np.asarray(f_mean_r2),
                               rtol=1e-3, atol=1e-4)
    np.testing.assert_allclose(np.asarray(out2["trace"]), np.asarray(trace_r2),
                               rtol=1e-3, atol=1e-3)
    np.testing.assert_allclose(np.asarray(out2["largest_eig"]), np.asarray(leig_r2),
                               rtol=1e-3, atol=1e-3)

    print("KERNEL_OK")
</pallas_src>

<mosaic_0001>
module attributes {stable_mosaic.version = 11 : i64} {
  func.func @_ensemble_stats_kernel(%arg0: i32, %arg1: memref<4x128xf32, #tpu.memory_space<vmem>>, %arg2: memref<4x128xf32, #tpu.memory_space<vmem>>, %arg3: memref<2x128xf32, #tpu.memory_space<vmem>>, %arg4: memref<1x128xf32, #tpu.memory_space<vmem>>, %arg5: memref<4x128xf32, #tpu.memory_space<vmem>>, %arg6: memref<4x4xf32, #tpu.memory_space<vmem>>, %arg7: memref<4x4xf32, #tpu.memory_space<vmem>>) attributes {dimension_semantics = [#tpu.dimension_semantics<arbitrary>], iteration_bounds = array<i64: 1>, scalar_prefetch = 0 : i64, scratch_operands = 1 : i64, tpu.core_type = #tpu.core_type<tc>, window_params = [{pipeline_mode = #tpu.pipeline_mode<synchronous>, transform_indices = @transform_0, window_bounds = array<i64: 4, 128>}, {transform_indices = @transform_1, window_bounds = array<i64: 4, 128>}, {pipeline_mode = #tpu.pipeline_mode<synchronous>, transform_indices = @transform_2, window_bounds = array<i64: 2, 128>}, {transform_indices = @transform_3, window_bounds = array<i64: 1, 128>}, {transform_indices = @transform_4, window_bounds = array<i64: 4, 128>}, {pipeline_mode = #tpu.pipeline_mode<synchronous>, transform_indices = @transform_5, window_bounds = array<i64: 4, 4>}]} {
    %c0_i32 = arith.constant 0 : i32
    %0 = arith.cmpi eq, %arg0, %c0_i32 : i32
    %1 = arith.extui %0 : i1 to i32
    %c0_i32_0 = arith.constant 0 : i32
    %2 = arith.cmpi ne, %1, %c0_i32_0 : i32
    scf.if %2 {
      %cst_14 = arith.constant 0.000000e+00 : f32
      %19 = vector.broadcast %cst_14 : f32 to vector<4x4xf32>
      %c0_15 = arith.constant 0 : index
      %c0_16 = arith.constant 0 : index
      %20 = vector.load %arg7[%c0_15, %c0_16] : memref<4x4xf32, #tpu.memory_space<vmem>>, vector<4x4xf32>
      tpu.vector_store %arg7[%c0_15, %c0_16], %19 {strides = array<i32>} : memref<4x4xf32, #tpu.memory_space<vmem>>, vector<4x4xf32>,
      %c0_17 = arith.constant 0 : index
      %c0_18 = arith.constant 0 : index
      %21 = vector.load %arg1[%c0_17, %c0_18] : memref<4x128xf32, #tpu.memory_space<vmem>>, vector<4x128xf32>
      %cst_19 = arith.constant dense<0.000000e+00> : vector<128xf32>
      %22 = vector.multi_reduction <add>, %21, %cst_19 [0] : vector<4x128xf32> to vector<128xf32>
      %23 = vector.shape_cast %22 : vector<128xf32> to vector<1x128xf32>
      %cst_20 = arith.constant 4.000000e+00 : f32
      %24 = vector.broadcast %cst_20 : f32 to vector<1x128xf32>
      %25 = arith.divf %23, %24 : vector<1x128xf32>
      %26 = vector.broadcast %25 : vector<1x128xf32> to vector<4x128xf32>
      %27 = arith.subf %21, %26 : vector<4x128xf32>
      %28 = arith.mulf %27, %27 : vector<4x128xf32>
      %cst_21 = arith.constant dense<0.000000e+00> : vector<128xf32>
      %29 = vector.multi_reduction <add>, %28, %cst_21 [0] : vector<4x128xf32> to vector<128xf32>
      %30 = vector.shape_cast %29 : vector<128xf32> to vector<1x128xf32>
      %cst_22 = arith.constant 3.000000e+00 : f32
      %31 = vector.broadcast %cst_22 : f32 to vector<1x128xf32>
      %32 = arith.divf %30, %31 : vector<1x128xf32>
      %33 = math.sqrt %32 : vector<1x128xf32>
      %c0_23 = arith.constant 0 : index
      %c0_24 = arith.constant 0 : index
      %34 = vector.load %arg3[%c0_23, %c0_24] : memref<2x128xf32, #tpu.memory_space<vmem>>, vector<1x128xf32>
      tpu.vector_store %arg3[%c0_23, %c0_24], %25 {strides = array<i32>} : memref<2x128xf32, #tpu.memory_space<vmem>>, vector<1x128xf32>,
      %c1 = arith.constant 1 : index
      %c0_25 = arith.constant 0 : index
      %35 = vector.load %arg3[%c1, %c0_25] : memref<2x128xf32, #tpu.memory_space<vmem>>, vector<1x128xf32>
      tpu.vector_store %arg3[%c1, %c0_25], %33 {strides = array<i32>} : memref<2x128xf32, #tpu.memory_space<vmem>>, vector<1x128xf32>,
    } else {
    }
    %c0 = arith.constant 0 : index
    %c0_1 = arith.constant 0 : index
    %3 = vector.load %arg2[%c0, %c0_1] : memref<4x128xf32, #tpu.memory_space<vmem>>, vector<4x128xf32>
    %cst = arith.constant dense<0.000000e+00> : vector<128xf32>
    %4 = vector.multi_reduction <add>, %3, %cst [0] : vector<4x128xf32> to vector<128xf32>
    %5 = vector.shape_cast %4 : vector<128xf32> to vector<1x128xf32>
    %cst_2 = arith.constant 4.000000e+00 : f32
    %6 = vector.broadcast %cst_2 : f32 to vector<1x128xf32>
    %7 = arith.divf %5, %6 : vector<1x128xf32>
    %8 = vector.broadcast %7 : vector<1x128xf32> to vector<4x128xf32>
    %9 = arith.subf %3, %8 : vector<4x128xf32>
    %c0_3 = arith.constant 0 : index
    %c0_4 = arith.constant 0 : index
    %10 = vector.load %arg4[%c0_3, %c0_4] : memref<1x128xf32, #tpu.memory_space<vmem>>, vector<1x128xf32>
    tpu.vector_store %arg4[%c0_3, %c0_4], %7 {strides = array<i32>} : memref<1x128xf32, #tpu.memory_space<vmem>>, vector<1x128xf32>,
    %c0_5 = arith.constant 0 : index
    %c0_6 = arith.constant 0 : index
    %11 = vector.load %arg5[%c0_5, %c0_6] : memref<4x128xf32, #tpu.memory_space<vmem>>, vector<4x128xf32>
    tpu.vector_store %arg5[%c0_5, %c0_6], %9 {strides = array<i32>} : memref<4x128xf32, #tpu.memory_space<vmem>>, vector<4x128xf32>,
    %c0_7 = arith.constant 0 : index
    %c0_8 = arith.constant 0 : index
    %12 = vector.load %arg7[%c0_7, %c0_8] : memref<4x4xf32, #tpu.memory_space<vmem>>, vector<4x4xf32>
    %cst_9 = arith.constant dense<0.000000e+00> : vector<4x4xf32>
    %13 = tpu.matmul %9, %9, %cst_9 {dimension_numbers = #tpu.dot_dimension_numbers<[1], [1], [0], [0], [0, 0, 1, 0], [], []>} : vector<4x128xf32>, vector<4x128xf32>, vector<4x4xf32> -> vector<4x4xf32>
    %14 = arith.addf %12, %13 : vector<4x4xf32>
    %c0_10 = arith.constant 0 : index
    %c0_11 = arith.constant 0 : index
    %15 = vector.load %arg7[%c0_10, %c0_11] : memref<4x4xf32, #tpu.memory_space<vmem>>, vector<4x4xf32>
    tpu.vector_store %arg7[%c0_10, %c0_11], %14 {strides = array<i32>} : memref<4x4xf32, #tpu.memory_space<vmem>>, vector<4x4xf32>,
    %c0_i32_12 = arith.constant 0 : i32
    %16 = arith.cmpi eq, %arg0, %c0_i32_12 : i32
    %17 = arith.extui %16 : i1 to i32
    %c0_i32_13 = arith.constant 0 : i32
    %18 = arith.cmpi ne, %17, %c0_i32_13 : i32
    scf.if %18 {
      %c0_14 = arith.constant 0 : index
      %c0_15 = arith.constant 0 : index
      %19 = vector.load %arg7[%c0_14, %c0_15] : memref<4x4xf32, #tpu.memory_space<vmem>>, vector<4x4xf32>
      %cst_16 = arith.constant 3.000000e+00 : f32
      %20 = vector.broadcast %cst_16 : f32 to vector<4x4xf32>
      %21 = arith.divf %19, %20 : vector<4x4xf32>
      %c0_17 = arith.constant 0 : index
      %c0_18 = arith.constant 0 : index
      %22 = vector.load %arg6[%c0_17, %c0_18] : memref<4x4xf32, #tpu.memory_space<vmem>>, vector<4x4xf32>
      tpu.vector_store %arg6[%c0_17, %c0_18], %21 {strides = array<i32>} : memref<4x4xf32, #tpu.memory_space<vmem>>, vector<4x4xf32>,
    } else {
    }
    return
  }
  func.func @transform_0(%arg0: i32) -> (i32, i32) {
    %c0_i32 = arith.constant 0 : i32
    %c0_i32_0 = arith.constant 0 : i32
    %c0_i32_1 = arith.constant 0 : i32
    return %c0_i32, %c0_i32_0 : i32, i32
  }
  func.func @transform_1(%arg0: i32) -> (i32, i32) {
    %c0_i32 = arith.constant 0 : i32
    %c0_i32_0 = arith.constant 0 : i32
    return %c0_i32, %arg0 : i32, i32
  }
  func.func @transform_2(%arg0: i32) -> (i32, i32) {
    %c0_i32 = arith.constant 0 : i32
    %c0_i32_0 = arith.constant 0 : i32
    %c0_i32_1 = arith.constant 0 : i32
    return %c0_i32, %c0_i32_0 : i32, i32
  }
  func.func @transform_3(%arg0: i32) -> (i32, i32) {
    %c0_i32 = arith.constant 0 : i32
    %c0_i32_0 = arith.constant 0 : i32
    return %c0_i32, %arg0 : i32, i32
  }
  func.func @transform_4(%arg0: i32) -> (i32, i32) {
    %c0_i32 = arith.constant 0 : i32
    %c0_i32_0 = arith.constant 0 : i32
    return %c0_i32, %arg0 : i32, i32
  }
  func.func @transform_5(%arg0: i32) -> (i32, i32) {
    %c0_i32 = arith.constant 0 : i32
    %c0_i32_0 = arith.constant 0 : i32
    %c0_i32_1 = arith.constant 0 : i32
    return %c0_i32, %c0_i32_0 : i32, i32
  }
}

</mosaic_0001>

<llo_original>
// kernel: tpu_custom_call.1
$region0: #{tpu_custom_call.1}
  #allocation0 [shape = 'u32[]', space=smem, size = 0x4, offset = 0x4, fixed_abs, tag = 'smem constant byte address 0x4 - core index']
  #allocation1 [shape = 'u32[144,128]{1,0:T(1,128)}', space=vmem, size = 0x12000, scoped, tag = 'internal scratch']
  #allocation2 [shape = 'f32[4,4]{1,0:T(4,128)}', space=vmem, size = 0x800, scoped, tag = 'scratch operand']
  %s0 = inlined_call_operand.hbm [shape: f32[4,128], index: 0, kind: input, shape index: {}]
  %s1 = inlined_call_operand.hbm [shape: f32[4,128], index: 1, kind: input, shape index: {}]
  %s2 = inlined_call_operand.hbm [shape: f32[2,128], index: 2, kind: output, shape index: {0}]
  %s3 = inlined_call_operand.hbm [shape: f32[1,128], index: 3, kind: output, shape index: {1}]
  %s4 = inlined_call_operand.hbm [shape: f32[4,128], index: 4, kind: output, shape index: {2}]
  %s5 = inlined_call_operand.hbm [shape: f32[4,4], index: 5, kind: output, shape index: {3}]
  %6 = xla_tuple %s2, %s3, %s4, %s5
  %s7 = sld [smem:[#allocation0]]
  $region58: #{tpu_custom_call.1} parent=0
    _
  %s9 = ssub.s32 1, %s7
  %s10 = scalar_select 0, %s9, %s7
  $region1: #{tpu_custom_call.1} parent=0
    #allocation3 [shape = 'u8[2048]{0}', space=vmem, size = 0x800, scoped, tag = 'input window, operand 0, single buffered']
    #allocation4 [shape = 's32[1]{0}', space=sflag, size = 0x4, scoped, tag = 'scoped memory for tpu_custom_call.1']
    #allocation5 [shape = 's32[1]{0}', space=sflag, size = 0x4, scoped, tag = 'scoped memory for tpu_custom_call.1']
    #allocation6 [shape = 'u8[2048]{0}', space=vmem, size = 0x800, scoped, tag = 'input window, operand 1, single buffered']
    #allocation7 [shape = 's32[1]{0}', space=sflag, size = 0x4, scoped, tag = 'scoped memory for tpu_custom_call.1']
    #allocation8 [shape = 'u8[1024]{0}', space=vmem, size = 0x400, scoped, tag = 'output window, operand 0, single buffered']
    #allocation9 [shape = 'u8[512]{0}', space=vmem, size = 0x400, scoped, tag = 'output window, operand 1, single buffered']
    #allocation10 [shape = 's32[1]{0}', space=sflag, size = 0x4, scoped, tag = 'scoped memory for tpu_custom_call.1']
    #allocation11 [shape = 'u8[2048]{0}', space=vmem, size = 0x800, scoped, tag = 'output window, operand 2, single buffered']
    #allocation12 [shape = 'u8[2048]{0}', space=vmem, size = 0x800, scoped, tag = 'output window, operand 3, single buffered']
    #allocation13 [shape = 's32[1]{0}', space=sflag, size = 0x4, scoped, tag = 'scoped memory for tpu_custom_call.1']
    %11 = vsyncpa [#allocation4], 0
    %12 = vsyncpa [#allocation7], 0
    %13 = vsyncpa [#allocation5], 0
    %14 = vsyncpa [#allocation10], 0
    %15 = vsyncpa [#allocation13], 0
    // Predicated region
    $region2: #{tpu_custom_call.1} parent=1 // pred_check
      _
    $region3: #{tpu_custom_call.1} parent=1 // pred_check_branch
      %17 = sbr.rel (0) target = $region5
    $region4: #{tpu_custom_call.1} parent=1 // pred_region
      %s19 = ssub.s32 64, 64
      %20 = vsyncadd [#allocation4], %s19
      %s22 = sshll.u32 [#allocation3], 4
      %s23 = int_to_ptr.vmem [resolvable:$true] %s22
      %25 = dma.hbm_to_vmem [thread:$0]  %s0, 64, %s23, [#allocation4]
    $region5: #{tpu_custom_call.1} parent=1 // pred_fallthru
      _
    // Predicated region
    $region6: #{tpu_custom_call.1} parent=1 // pred_check
      _
    $region7: #{tpu_custom_call.1} parent=1 // pred_check_branch
      %27 = sbr.rel (0) target = $region9
    $region8: #{tpu_custom_call.1} parent=1 // pred_region
      %s29 = ssub.s32 64, 64
      %30 = vsyncadd [#allocation7], %s29
      %s32 = sshll.u32 [#allocation6], 4
      %s33 = int_to_ptr.vmem [resolvable:$true] %s32
      %35 = dma.hbm_to_vmem [thread:$0]  %s1, 64, %s33, [#allocation7]
    $region9: #{tpu_custom_call.1} parent=1 // pred_fallthru
      _
    // Predicated region
    $region10: #{tpu_custom_call.1} parent=1 // pred_check
      _
    $region11: #{tpu_custom_call.1} parent=1 // pred_check_branch
      %37 = sbr.rel (0) target = $region13
    $region12: #{tpu_custom_call.1} parent=1 // pred_region
      %38 = dma.done [#allocation4], 64
    $region13: #{tpu_custom_call.1} parent=1 // pred_fallthru
      _
    // Predicated region
    $region14: #{tpu_custom_call.1} parent=1 // pred_check
      _
    $region15: #{tpu_custom_call.1} parent=1 // pred_check_branch
      %40 = sbr.rel (0) target = $region17
    $region16: #{tpu_custom_call.1} parent=1 // pred_region
      %41 = dma.done [#allocation7], 64
    $region17: #{tpu_custom_call.1} parent=1 // pred_fallthru
      _
    %p42 = scmp.eq.s32.totalorder 0, 0
    // Predicated region
    $region18: #{tpu_custom_call.1} parent=1 // pred_check
      %p43 = pneg %p42
    $region19: #{tpu_custom_call.1} parent=1 // pred_check_branch
      %45 = sbr.rel (%p43) target = $region21
    $region20: #{tpu_custom_call.1} parent=1 // pred_region
      %vm46 = vcmask 27648
      %47 = vst.msk [vmem:[#allocation2] sm:$0xf] %vm46, 0.0
      %v48 = vld [vmem:[#allocation3] sm:$0xf]
      %vm49 = vcmask 1043456
      %v50 = vsel %vm49, %v48, 0.0
      %v51 = vrot.slane %v50, 4
      %v52 = vadd.f32 %v50, %v51
      %v53 = vrot.slane %v52, 2
      %v54 = vadd.f32 %v52, %v53
      %v55 = vrot.slane %v54, 1
      %v56 = vadd.f32 %v54, %v55
      %v57 = vrcp.pop 4.0
      %v58 = vmul.f32 %v56, %v57
      %v59 = vsub.f32 %v48, %v58
      %v60 = vmul.f32 %v59, %v59
      %v61 = vsel %vm49, %v60, 0.0
      %v62 = vrot.slane %v61, 4
      %v63 = vadd.f32 %v61, %v62
      %v64 = vrot.slane %v63, 2
      %v65 = vadd.f32 %v63, %v64
      %v66 = vrot.slane %v65, 1
      %v67 = vadd.f32 %v65, %v66
      %v68 = vrcp.pop 3.0
      %v69 = vmul.f32 %v67, %v68
      %v70 = vrsqrt.pop %v69
      %v71 = vmul.f32 %v69, %v70
      %vm72 = vcmp.eq.f32.partialorder %v69, inf
      %v73 = vsel %vm72, %v69, %v71
      %vm74 = vcmp.eq.f32.partialorder %v69, 0.0
      %v75 = vand.u32 %v69, 2147483648
      %v76 = vsel %vm74, %v75, %v73
      %77 = vst [vmem:[#allocation8] sm:$0x1] %v58
      %78 = vst [vmem:[#allocation8 + $0x1] sm:$0x1] %v76
    $region21: #{tpu_custom_call.1} parent=1 // pred_fallthru
      _
    %v79 = vld [vmem:[#allocation6] sm:$0xf]
    %vm80 = vcmask 1043456
    %v81 = vsel %vm80, %v79, 0.0
    %v82 = vrot.slane %v81, 4
    %v83 = vadd.f32 %v81, %v82
    %v84 = vrot.slane %v83, 2
    %v85 = vadd.f32 %v83, %v84
    %v86 = vrot.slane %v85, 1
    %v87 = vadd.f32 %v85, %v86
    %v88 = vrcp.pop 4.0
    %v89 = vmul.f32 %v87, %v88
    %v90 = vsub.f32 %v79, %v89
    %91 = vst [vmem:[#allocation9] sm:$0x1] %v89
    %92 = vst [vmem:[#allocation11] sm:$0xf] %v90
    %v93 = vld [vmem:[#allocation2] sm:$0xf]
    %94 = vmatprep.subr.mxu0 0.0
    %95 = vmatpush1.xpose.msra.mxu0 %v90
    %96 = vmatprep.subr.mxu0 0.0
    %97 = vmatpush1.xpose.msra.mxu0 0.0
    %98 = vmatprep.subr.mxu0 0.0
    %99 = vmatpush1.xpose.msra.mxu0 0.0
    %100 = vmatprep.subr.mxu0 0.0
    %101 = vmatpush1.xpose.msra.mxu0 0.0
    %102 = vmatprep.subr.mxu0 0.0
    %103 = vmatpush1.xpose.msra.mxu0 0.0
    %104 = vmatprep.subr.mxu0 0.0
    %105 = vmatpush1.xpose.msra.mxu0 0.0
    %106 = vmatprep.subr.mxu0 0.0
    %107 = vmatpush1.xpose.msra.mxu0 0.0
    %108 = vmatprep.subr.mxu0 0.0
    %109 = vmatpush1.xpose.msra.mxu0 0.0
    %110 = vmatprep.subr.mxu0 0.0
    %111 = vmatpush1.xpose.msra.mxu0 0.0
    %112 = vmatprep.subr.mxu0 0.0
    %113 = vmatpush1.xpose.msra.mxu0 0.0
    %114 = vmatprep.subr.mxu0 0.0
    %115 = vmatpush1.xpose.msra.mxu0 0.0
    %116 = vmatprep.subr.mxu0 0.0
    %117 = vmatpush1.xpose.msra.mxu0 0.0
    %118 = vmatprep.subr.mxu0 0.0
    %119 = vmatpush1.xpose.msra.mxu0 0.0
    %120 = vmatprep.subr.mxu0 0.0
    %121 = vmatpush1.xpose.msra.mxu0 0.0
    %122 = vmatprep.subr.mxu0 0.0
    %123 = vmatpush1.xpose.msra.mxu0 0.0
    %124 = vmatprep.subr.mxu0 0.0
    %125 = vmatpush1.xpose.msra.mxu0 0.0
    %126 = vmatprep.subr.mxu0 0.0
    %127 = vmatpush1.xpose.msra.mxu0 0.0
    %128 = vmatprep.subr.mxu0 0.0
    %129 = vmatpush1.xpose.msra.mxu0 0.0
    %130 = vmatprep.subr.mxu0 0.0
    %131 = vmatpush1.xpose.msra.mxu0 0.0
    %132 = vmatprep.subr.mxu0 0.0
    %133 = vmatpush1.xpose.msra.mxu0 0.0
    %134 = vmatprep.subr.mxu0 0.0
    %135 = vmatpush1.xpose.msra.mxu0 0.0
    %136 = vmatprep.subr.mxu0 0.0
    %137 = vmatpush1.xpose.msra.mxu0 0.0
    %138 = vmatprep.subr.mxu0 0.0
    %139 = vmatpush1.xpose.msra.mxu0 0.0
    %140 = vmatprep.subr.mxu0 0.0
    %141 = vmatpush1.xpose.msra.mxu0 0.0
    %142 = vmatprep.subr.mxu0 0.0
    %143 = vmatpush1.xpose.msra.mxu0 0.0
    %144 = vmatprep.subr.mxu0 0.0
    %145 = vmatpush1.xpose.msra.mxu0 0.0
    %146 = vmatprep.subr.mxu0 0.0
    %147 = vmatpush1.xpose.msra.mxu0 0.0
    %148 = vmatprep.subr.mxu0 0.0
    %149 = vmatpush1.xpose.msra.mxu0 0.0
    %150 = vmatprep.subr.mxu0 0.0
    %151 = vmatpush1.xpose.msra.mxu0 0.0
    %152 = vmatprep.subr.mxu0 0.0
    %153 = vmatpush1.xpose.msra.mxu0 0.0
    %154 = vmatprep.subr.mxu0 0.0
    %155 = vmatpush1.xpose.msra.mxu0 0.0
    %156 = vmatprep.subr.mxu0 0.0
    %157 = vmatpush1.xpose.msra.mxu0 0.0
    %158 = vmatprep.mubr.f32.mxu0 0.0
    %159 = vmatmul.mubr.f32.gmra.mrb[0].mxu0 %v90
    %v160 = vpop.f32.mrb[0].mxu0
    %v161 = vadd.f32 0.0, %v160
    %v162 = vpop.f32.mrb[0].mxu0
    %163 = vdwg.mxu0
    %v164 = vadd.f32 %v93, %v161
    %vm165 = vcmask 27648
    %166 = vst.msk [vmem:[#allocation2] sm:$0xf] %vm165, %v164
    // Predicated region
    $region22: #{tpu_custom_call.1} parent=1 // pred_check
      %p167 = pneg %p42
    $region23: #{tpu_custom_call.1} parent=1 // pred_check_branch
      %169 = sbr.rel (%p167) target = $region25
    $region24: #{tpu_custom_call.1} parent=1 // pred_region
      %v170 = vld [vmem:[#allocation2] sm:$0xf]
      %v171 = vrcp.pop 3.0
      %v172 = vmul.f32 %v170, %v171
      %173 = vst.msk [vmem:[#allocation12] sm:$0xf] %vm165, %v172
    $region25: #{tpu_custom_call.1} parent=1 // pred_fallthru
      _
    // Predicated region
    $region26: #{tpu_custom_call.1} parent=1 // pred_check
      _
    $region27: #{tpu_custom_call.1} parent=1 // pred_check_branch
      %175 = sbr.rel (0) target = $region29
    $region28: #{tpu_custom_call.1} parent=1 // pred_region
      %s177 = ssub.s32 32, 32
      %178 = vsyncadd [#allocation5], %s177
      %s180 = sshll.u32 [#allocation8], 4
      %s181 = int_to_ptr.vmem [resolvable:$true] %s180
      %183 = dma.vmem_to_hbm [thread:$0]  %s181, 32, %s2, [#allocation5]
    $region29: #{tpu_custom_call.1} parent=1 // pred_fallthru
      _
    // Predicated region
    $region30: #{tpu_custom_call.1} parent=1 // pred_check
      _
    $region31: #{tpu_custom_call.1} parent=1 // pred_check_branch
      %185 = sbr.rel (0) target = $region33
    $region32: #{tpu_custom_call.1} parent=1 // pred_region
      %s187 = ssub.s32 16, 16
      %188 = vsyncadd [#allocation10], %s187
      %s190 = sshll.u32 [#allocation9], 4
      %s191 = int_to_ptr.vmem [resolvable:$true] %s190
      %193 = dma.vmem_to_hbm [thread:$0]  %s191, 16, %s3, [#allocation10]
    $region33: #{tpu_custom_call.1} parent=1 // pred_fallthru
      _
    // Predicated region
    $region34: #{tpu_custom_call.1} parent=1 // pred_check
      _
    $region35: #{tpu_custom_call.1} parent=1 // pred_check_branch
      %195 = sbr.rel (0) target = $region37
    $region36: #{tpu_custom_call.1} parent=1 // pred_region
      %s197 = ssub.s32 64, 64
      %198 = vsyncadd [#allocation10], %s197
      %s200 = sshll.u32 [#allocation11], 4
      %s201 = int_to_ptr.vmem [resolvable:$true] %s200
      %203 = dma.vmem_to_hbm [thread:$0]  %s201, 64, %s4, [#allocation10]
    $region37: #{tpu_custom_call.1} parent=1 // pred_fallthru
      _
    // Predicated region
    $region38: #{tpu_custom_call.1} parent=1 // pred_check
      _
    $region39: #{tpu_custom_call.1} parent=1 // pred_check_branch
      %205 = sbr.rel (0) target = $region41
    $region40: #{tpu_custom_call.1} parent=1 // pred_region
      %s207 = ssub.s32 64, 64
      %208 = vsyncadd [#allocation13], %s207
      %s210 = sshll.u32 [#allocation12], 4
      %s211 = int_to_ptr.vmem [resolvable:$true] %s210
      %213 = dma.vmem_to_hbm [thread:$0]  %s211, 64, %s5, [#allocation13]
    $region41: #{tpu_custom_call.1} parent=1 // pred_fallthru
      _
    // Predicated region
    $region42: #{tpu_custom_call.1} parent=1 // pred_check
      _
    $region43: #{tpu_custom_call.1} parent=1 // pred_check_branch
      %215 = sbr.rel (0) target = $region45
    $region44: #{tpu_custom_call.1} parent=1 // pred_region
      %216 = dma.done [#allocation5], 32
    $region45: #{tpu_custom_call.1} parent=1 // pred_fallthru
      _
    // Predicated region
    $region46: #{tpu_custom_call.1} parent=1 // pred_check
      _
    $region47: #{tpu_custom_call.1} parent=1 // pred_check_branch
      %218 = sbr.rel (0) target = $region49
    $region48: #{tpu_custom_call.1} parent=1 // pred_region
      %219 = dma.done [#allocation10], 16
    $region49: #{tpu_custom_call.1} parent=1 // pred_fallthru
      _
    // Predicated region
    $region50: #{tpu_custom_call.1} parent=1 // pred_check
      _
    $region51: #{tpu_custom_call.1} parent=1 // pred_check_branch
      %221 = sbr.rel (0) target = $region53
    $region52: #{tpu_custom_call.1} parent=1 // pred_region
      %222 = dma.done [#allocation10], 64
    $region53: #{tpu_custom_call.1} parent=1 // pred_fallthru
      _
    // Predicated region
    $region54: #{tpu_custom_call.1} parent=1 // pred_check
      _
    $region55: #{tpu_custom_call.1} parent=1 // pred_check_branch
      %224 = sbr.rel (0) target = $region57
    $region56: #{tpu_custom_call.1} parent=1 // pred_region
      %225 = dma.done [#allocation13], 64
    $region57: #{tpu_custom_call.1} parent=1 // pred_fallthru
      _
    %226 = vsyncpa [#allocation4], 1
    %227 = vsyncpa [#allocation7], 1
    %228 = vsyncpa [#allocation5], 1
    %229 = vsyncpa [#allocation10], 1
    %230 = vsyncpa [#allocation13], 1

</llo_original>
